<compile_context>
chip_gen: v7x
topology: tpu7x:2x2x1
jax: 0.10.0
libtpu: 0.0.40
codegen_flags: <defaults>
</compile_context>

<pallas_src>
import functools

import jax
import jax.numpy as jnp
from jax.experimental import pallas as pl
from jax.experimental.pallas import tpu as pltpu


def _round_up(x, m):
    return ((x + m - 1) // m) * m


def gru_kernel(x_ref, wx_ref, whrz_ref, whh_ref, b_ref, h_ref, *, hidden_size):
    """One (m-tile, period) grid step.

    x_ref    : (1, C, TM)      this period's inputs for this M tile (lane-major M)
    wx_ref   : (1, 3*Hd, C)    fused [W_xr; W_xz; W_xh]  (stored as (out, in))
    whrz_ref : (1, 2*Hd, Hd)   fused [W_hr; W_hz]
    whh_ref  : (1, Hd, Hd)     W_hh
    b_ref    : (1, 3*Hd, 1)    folded biases [bxr+bhr; bxz+bhz; bxh+bhh]
    h_ref    : (Hd, TM)        resident hidden-state carry / output
    """
    Hd = hidden_size
    p = pl.program_id(1)

    x = x_ref[0]  # (C, TM)

    # All three x-side gate projections in a single MXU pass: (3*Hd, TM).
    gx = jnp.dot(wx_ref[0], x, preferred_element_type=jnp.float32) + b_ref[0]
    gx_r = gx[:Hd]
    gx_z = gx[Hd:2 * Hd]
    gx_h = gx[2 * Hd:]

    @pl.when(p == 0)
    def _():
        # H_pre == 0: H-side matmuls vanish (their biases are already folded
        # into b_ref) and rt is irrelevant because rt * H_pre == 0.
        zt = jax.nn.sigmoid(gx_z)
        h_cand = jnp.tanh(gx_h)
        h_ref[...] = (1.0 - zt) * h_cand

    @pl.when(p > 0)
    def _():
        h = h_ref[...]  # (Hd, TM)
        # r and z H-side projections fused: (2*Hd, Hd) @ (Hd, TM).
        gh = jnp.dot(whrz_ref[0], h, preferred_element_type=jnp.float32)
        rt = jax.nn.sigmoid(gx_r + gh[:Hd])
        zt = jax.nn.sigmoid(gx_z + gh[Hd:])
        h_cand = jnp.tanh(
            gx_h + jnp.dot(whh_ref[0], rt * h, preferred_element_type=jnp.float32))
        # zt*h + (1-zt)*h_cand with one fewer VPU multiply.
        h_ref[...] = h_cand + zt * (h - h_cand)


def gru_forward(X, params, *, tm_max=1024):
    """X: (B, P, N, T, C) float32. params: dict of stacked per-period weights
    (weights (P, in, out), biases (P, 1, out)), same layout as init_params."""
    B, P, N, T, C = X.shape
    Hd = params["wxr"].shape[-1]
    M = B * N * T

    LANE = 128
    TM = _round_up(min(tm_max, _round_up(M, LANE)), LANE)
    M_pad = _round_up(M, TM)

    # (B, P, N, T, C) -> (P, C, B, N, T) -> (P, C, M): rows ride the lane axis.
    x = jnp.transpose(X, (1, 4, 0, 2, 3)).reshape(P, C, M)
    if M_pad != M:
        x = jnp.pad(x, ((0, 0), (0, 0), (0, M_pad - M)))

    # Fuse + transpose weights so each matmul is (out, in) @ (in, TM).
    wx = jnp.transpose(
        jnp.concatenate([params["wxr"], params["wxz"], params["wxh"]], axis=-1),
        (0, 2, 1))                                       # (P, 3*Hd, C)
    whrz = jnp.transpose(
        jnp.concatenate([params["whr"], params["whz"]], axis=-1),
        (0, 2, 1))                                       # (P, 2*Hd, Hd)
    whh = jnp.transpose(params["whh"], (0, 2, 1))        # (P, Hd, Hd)
    # Fold x-side and h-side biases (exact: nn.Linear always adds its bias).
    b = jnp.transpose(
        jnp.concatenate([params["bxr"] + params["bhr"],
                         params["bxz"] + params["bhz"],
                         params["bxh"] + params["bhh"]], axis=-1),
        (0, 2, 1))                                       # (P, 3*Hd, 1)

    grid = (M_pad // TM, P)   # P innermost: sequential recurrence per M tile.

    grid_spec = pltpu.PrefetchScalarGridSpec(
        num_scalar_prefetch=0,
        grid=grid,
        in_specs=[
            pl.BlockSpec((1, C, TM), lambda m, p: (p, 0, m)),        # x
            pl.BlockSpec((1, 3 * Hd, C), lambda m, p: (p, 0, 0)),    # W_x fused
            pl.BlockSpec((1, 2 * Hd, Hd), lambda m, p: (p, 0, 0)),   # W_hr|W_hz
            pl.BlockSpec((1, Hd, Hd), lambda m, p: (p, 0, 0)),       # W_hh
            pl.BlockSpec((1, 3 * Hd, 1), lambda m, p: (p, 0, 0)),    # folded bias
        ],
        out_specs=pl.BlockSpec((Hd, TM), lambda m, p: (0, m)),       # resident H
    )

    h = pl.pallas_call(
        functools.partial(gru_kernel, hidden_size=Hd),
        out_shape=jax.ShapeDtypeStruct((Hd, M_pad), jnp.float32),
        grid_spec=grid_spec,
        compiler_params=pltpu.CompilerParams(
            dimension_semantics=("parallel", "arbitrary")),
    )(x, wx, whrz, whh, b)

    # (Hd, M_pad) -> (M, Hd) -> (B, N, T, Hd)
    return h[:, :M].T.reshape(B, N, T, Hd)


def init_params(key, num_periods, input_size, hidden_size):
    """Deterministic synthetic parameters matching GRUCell's nn.Linear shapes,
    stacked over periods.  Weights stored as (P, in, out); biases as (P, 1, out)."""
    keys = jax.random.split(key, 12)
    P, C, Hd = num_periods, input_size, hidden_size

    def w(k, fan_in):
        bound = 1.0 / jnp.sqrt(fan_in)
        return jax.random.uniform(k, (P, fan_in, Hd), jnp.float32, -bound, bound)

    def b(k, fan_in):
        bound = 1.0 / jnp.sqrt(fan_in)
        return jax.random.uniform(k, (P, 1, Hd), jnp.float32, -bound, bound)

    return {
        "wxr": w(keys[0], C), "whr": w(keys[1], Hd),
        "wxz": w(keys[2], C), "whz": w(keys[3], Hd),
        "wxh": w(keys[4], C), "whh": w(keys[5], Hd),
        "bxr": b(keys[6], C), "bhr": b(keys[7], Hd),
        "bxz": b(keys[8], C), "bhz": b(keys[9], Hd),
        "bxh": b(keys[10], C), "bhh": b(keys[11], Hd),
    }


def gru_reference(X, params):
    """Pure-JAX reference of the PyTorch forward, for sanity checking."""
    B, P, N, T, C = X.shape
    Hd = params["wxr"].shape[-1]
    H = jnp.zeros((B, N, T, Hd), jnp.float32)
    for p in range(P):
        Xp = X[:, p]
        rt = jax.nn.sigmoid(Xp @ params["wxr"][p] + params["bxr"][p]
                            + H @ params["whr"][p] + params["bhr"][p])
        zt = jax.nn.sigmoid(Xp @ params["wxz"][p] + params["bxz"][p]
                            + H @ params["whz"][p] + params["bhz"][p])
        hc = jnp.tanh(Xp @ params["wxh"][p] + params["bxh"][p]
                      + (rt * H) @ params["whh"][p] + params["bhh"][p])
        H = zt * H + (1.0 - zt) * hc
    return H


if __name__ == "__main__":
    B, P, N, T, C, Hd = 2, 3, 4, 8, 4, 32

    key = jax.random.PRNGKey(0)
    kx, kp = jax.random.split(key)
    X = jax.random.normal(kx, (B, P, N, T, C), jnp.float32)
    params = init_params(kp, P, C, Hd)

    out = gru_forward(X, params)
    out = jax.block_until_ready(out)

    ref = gru_reference(X, params)
    assert out.shape == (B, N, T, Hd)
    assert jnp.allclose(out, ref, atol=1e-5, rtol=1e-5)

    print("KERNEL_OK")
</pallas_src>

<mosaic_0001>
module attributes {stable_mosaic.version = 11 : i64} {
  func.func @gru_kernel(%arg0: i32, %arg1: i32, %arg2: memref<1x4x128xf32, #tpu.memory_space<vmem>>, %arg3: memref<1x96x4xf32, #tpu.memory_space<vmem>>, %arg4: memref<1x64x32xf32, #tpu.memory_space<vmem>>, %arg5: memref<1x32x32xf32, #tpu.memory_space<vmem>>, %arg6: memref<1x96x1xf32, #tpu.memory_space<vmem>>, %arg7: memref<32x128xf32, #tpu.memory_space<vmem>>) attributes {dimension_semantics = [#tpu.dimension_semantics<parallel>, #tpu.dimension_semantics<arbitrary>], iteration_bounds = array<i64: 1, 3>, scalar_prefetch = 0 : i64, scratch_operands = 0 : i64, tpu.core_type = #tpu.core_type<tc>, window_params = [{transform_indices = @transform_0, window_bounds = array<i64: 1, 4, 128>}, {transform_indices = @transform_1, window_bounds = array<i64: 1, 96, 4>}, {transform_indices = @transform_2, window_bounds = array<i64: 1, 64, 32>}, {transform_indices = @transform_3, window_bounds = array<i64: 1, 32, 32>}, {transform_indices = @transform_4, window_bounds = array<i64: 1, 96, 1>}, {transform_indices = @transform_5, window_bounds = array<i64: 32, 128>}]} {
    %c0 = arith.constant 0 : index
    %c0_0 = arith.constant 0 : index
    %c0_1 = arith.constant 0 : index
    %0 = vector.load %arg2[%c0, %c0_0, %c0_1] : memref<1x4x128xf32, #tpu.memory_space<vmem>>, vector<1x4x128xf32>
    %1 = vector.shape_cast %0 : vector<1x4x128xf32> to vector<4x128xf32>
    %c0_2 = arith.constant 0 : index
    %c0_3 = arith.constant 0 : index
    %c0_4 = arith.constant 0 : index
    %2 = vector.load %arg3[%c0_2, %c0_3, %c0_4] : memref<1x96x4xf32, #tpu.memory_space<vmem>>, vector<1x96x4xf32>
    %3 = vector.shape_cast %2 : vector<1x96x4xf32> to vector<96x4xf32>
    %cst = arith.constant dense<0.000000e+00> : vector<96x128xf32>
    %4 = tpu.matmul %3, %1, %cst {dimension_numbers = #tpu.dot_dimension_numbers<[1], [0], [0], [1], [0, 0, 1, 1], [], []>} : vector<96x4xf32>, vector<4x128xf32>, vector<96x128xf32> -> vector<96x128xf32>
    %c0_5 = arith.constant 0 : index
    %c0_6 = arith.constant 0 : index
    %c0_7 = arith.constant 0 : index
    %5 = vector.load %arg6[%c0_5, %c0_6, %c0_7] : memref<1x96x1xf32, #tpu.memory_space<vmem>>, vector<1x96x1xf32>
    %6 = vector.shape_cast %5 : vector<1x96x1xf32> to vector<96x1xf32>
    %7 = vector.broadcast %6 : vector<96x1xf32> to vector<96x128xf32>
    %8 = arith.addf %4, %7 : vector<96x128xf32>
    %9 = vector.extract_strided_slice %8 {offsets = [0, 0], sizes = [32, 128], strides = [1, 1]} : vector<96x128xf32> to vector<32x128xf32>
    %10 = vector.extract_strided_slice %8 {offsets = [32, 0], sizes = [32, 128], strides = [1, 1]} : vector<96x128xf32> to vector<32x128xf32>
    %11 = vector.extract_strided_slice %8 {offsets = [64, 0], sizes = [32, 128], strides = [1, 1]} : vector<96x128xf32> to vector<32x128xf32>
    %c0_i32 = arith.constant 0 : i32
    %12 = arith.cmpi eq, %arg1, %c0_i32 : i32
    %13 = arith.extui %12 : i1 to i32
    %c0_i32_8 = arith.constant 0 : i32
    %14 = arith.cmpi ne, %13, %c0_i32_8 : i32
    scf.if %14 {
      %18 = arith.negf %10 : vector<32x128xf32>
      %19 = math.exp %18 : vector<32x128xf32>
      %cst_11 = arith.constant 1.000000e+00 : f32
      %20 = vector.broadcast %cst_11 : f32 to vector<32x128xf32>
      %21 = arith.addf %20, %19 : vector<32x128xf32>
      %22 = arith.divf %20, %21 : vector<32x128xf32>
      %23 = math.tanh %11 : vector<32x128xf32>
      %cst_12 = arith.constant 1.000000e+00 : f32
      %24 = vector.broadcast %cst_12 : f32 to vector<32x128xf32>
      %25 = arith.subf %24, %22 : vector<32x128xf32>
      %26 = arith.mulf %25, %23 : vector<32x128xf32>
      %c0_13 = arith.constant 0 : index
      %c0_14 = arith.constant 0 : index
      %27 = vector.load %arg7[%c0_13, %c0_14] : memref<32x128xf32, #tpu.memory_space<vmem>>, vector<32x128xf32>
      tpu.vector_store %arg7[%c0_13, %c0_14], %26 {strides = array<i32>} : memref<32x128xf32, #tpu.memory_space<vmem>>, vector<32x128xf32>,
    } else {
    }
    %c0_i32_9 = arith.constant 0 : i32
    %15 = arith.cmpi sgt, %arg1, %c0_i32_9 : i32
    %16 = arith.extui %15 : i1 to i32
    %c0_i32_10 = arith.constant 0 : i32
    %17 = arith.cmpi ne, %16, %c0_i32_10 : i32
    scf.if %17 {
      %c0_11 = arith.constant 0 : index
      %c0_12 = arith.constant 0 : index
      %18 = vector.load %arg7[%c0_11, %c0_12] : memref<32x128xf32, #tpu.memory_space<vmem>>, vector<32x128xf32>
      %c0_13 = arith.constant 0 : index
      %c0_14 = arith.constant 0 : index
      %c0_15 = arith.constant 0 : index
      %19 = vector.load %arg4[%c0_13, %c0_14, %c0_15] : memref<1x64x32xf32, #tpu.memory_space<vmem>>, vector<1x64x32xf32>
      %20 = vector.shape_cast %19 : vector<1x64x32xf32> to vector<64x32xf32>
      %cst_16 = arith.constant dense<0.000000e+00> : vector<64x128xf32>
      %21 = tpu.matmul %20, %18, %cst_16 {dimension_numbers = #tpu.dot_dimension_numbers<[1], [0], [0], [1], [0, 0, 1, 1], [], []>} : vector<64x32xf32>, vector<32x128xf32>, vector<64x128xf32> -> vector<64x128xf32>
      %22 = vector.extract_strided_slice %21 {offsets = [0, 0], sizes = [32, 128], strides = [1, 1]} : vector<64x128xf32> to vector<32x128xf32>
      %23 = arith.addf %9, %22 : vector<32x128xf32>
      %24 = arith.negf %23 : vector<32x128xf32>
      %25 = math.exp %24 : vector<32x128xf32>
      %cst_17 = arith.constant 1.000000e+00 : f32
      %26 = vector.broadcast %cst_17 : f32 to vector<32x128xf32>
      %27 = arith.addf %26, %25 : vector<32x128xf32>
      %28 = arith.divf %26, %27 : vector<32x128xf32>
      %29 = vector.extract_strided_slice %21 {offsets = [32, 0], sizes = [32, 128], strides = [1, 1]} : vector<64x128xf32> to vector<32x128xf32>
      %30 = arith.addf %10, %29 : vector<32x128xf32>
      %31 = arith.negf %30 : vector<32x128xf32>
      %32 = math.exp %31 : vector<32x128xf32>
      %cst_18 = arith.constant 1.000000e+00 : f32
      %33 = vector.broadcast %cst_18 : f32 to vector<32x128xf32>
      %34 = arith.addf %33, %32 : vector<32x128xf32>
      %35 = arith.divf %33, %34 : vector<32x128xf32>
      %c0_19 = arith.constant 0 : index
      %c0_20 = arith.constant 0 : index
      %c0_21 = arith.constant 0 : index
      %36 = vector.load %arg5[%c0_19, %c0_20, %c0_21] : memref<1x32x32xf32, #tpu.memory_space<vmem>>, vector<1x32x32xf32>
      %37 = vector.shape_cast %36 : vector<1x32x32xf32> to vector<32x32xf32>
      %38 = arith.mulf %28, %18 : vector<32x128xf32>
      %cst_22 = arith.constant dense<0.000000e+00> : vector<32x128xf32>
      %39 = tpu.matmul %37, %38, %cst_22 {dimension_numbers = #tpu.dot_dimension_numbers<[1], [0], [0], [1], [0, 0, 1, 1], [], []>} : vector<32x32xf32>, vector<32x128xf32>, vector<32x128xf32> -> vector<32x128xf32>
      %40 = arith.addf %11, %39 : vector<32x128xf32>
      %41 = math.tanh %40 : vector<32x128xf32>
      %42 = arith.subf %18, %41 : vector<32x128xf32>
      %43 = arith.mulf %35, %42 : vector<32x128xf32>
      %44 = arith.addf %41, %43 : vector<32x128xf32>
      %c0_23 = arith.constant 0 : index
      %c0_24 = arith.constant 0 : index
      %45 = vector.load %arg7[%c0_23, %c0_24] : memref<32x128xf32, #tpu.memory_space<vmem>>, vector<32x128xf32>
      tpu.vector_store %arg7[%c0_23, %c0_24], %44 {strides = array<i32>} : memref<32x128xf32, #tpu.memory_space<vmem>>, vector<32x128xf32>,
    } else {
    }
    return
  }
  func.func @transform_0(%arg0: i32, %arg1: i32) -> (i32, i32, i32) {
    %c0_i32 = arith.constant 0 : i32
    %c0_i32_0 = arith.constant 0 : i32
    return %arg1, %c0_i32, %arg0 : i32, i32, i32
  }
  func.func @transform_1(%arg0: i32, %arg1: i32) -> (i32, i32, i32) {
    %c0_i32 = arith.constant 0 : i32
    %c0_i32_0 = arith.constant 0 : i32
    %c0_i32_1 = arith.constant 0 : i32
    return %arg1, %c0_i32, %c0_i32_0 : i32, i32, i32
  }
  func.func @transform_2(%arg0: i32, %arg1: i32) -> (i32, i32, i32) {
    %c0_i32 = arith.constant 0 : i32
    %c0_i32_0 = arith.constant 0 : i32
    %c0_i32_1 = arith.constant 0 : i32
    return %arg1, %c0_i32, %c0_i32_0 : i32, i32, i32
  }
  func.func @transform_3(%arg0: i32, %arg1: i32) -> (i32, i32, i32) {
    %c0_i32 = arith.constant 0 : i32
    %c0_i32_0 = arith.constant 0 : i32
    %c0_i32_1 = arith.constant 0 : i32
    return %arg1, %c0_i32, %c0_i32_0 : i32, i32, i32
  }
  func.func @transform_4(%arg0: i32, %arg1: i32) -> (i32, i32, i32) {
    %c0_i32 = arith.constant 0 : i32
    %c0_i32_0 = arith.constant 0 : i32
    %c0_i32_1 = arith.constant 0 : i32
    return %arg1, %c0_i32, %c0_i32_0 : i32, i32, i32
  }
  func.func @transform_5(%arg0: i32, %arg1: i32) -> (i32, i32) {
    %c0_i32 = arith.constant 0 : i32
    %c0_i32_0 = arith.constant 0 : i32
    return %c0_i32, %arg0 : i32, i32
  }
}

</mosaic_0001>

<llo_original>
// kernel: tpu_custom_call.1
$region0: #{tpu_custom_call.1}
  #allocation0 [shape = 'u32[]', space=smem, size = 0x4, offset = 0x4, fixed_abs, tag = 'smem constant byte address 0x4 - core index']
  #allocation1 [shape = 'u32[144,128]{1,0:T(1,128)}', space=vmem, size = 0x12000, scoped, tag = 'internal scratch']
  %s0 = inlined_call_operand.vmem [shape: f32[3,4,128], index: 0, kind: input, shape index: {}]
  %s1 = inlined_call_operand.vmem [shape: f32[3,96,4], index: 1, kind: input, shape index: {}]
  %s2 = inlined_call_operand.vmem [shape: f32[3,64,32], index: 2, kind: input, shape index: {}]
  %s3 = inlined_call_operand.vmem [shape: f32[3,32,32], index: 3, kind: input, shape index: {}]
  %s4 = inlined_call_operand.vmem [shape: f32[3,96,1], index: 4, kind: input, shape index: {}]
  %s5 = inlined_call_operand.hbm [shape: f32[32,128], index: 5, kind: output, shape index: {}]
  %s6 = sld [smem:[#allocation0]]
  $region61: #{tpu_custom_call.1} parent=0
    _
  %s8 = ssub.s32 1, %s6
  %s9 = scalar_select 0, %s8, %s6
  $region1: #{tpu_custom_call.1} parent=0
    #allocation2 [shape = 'u8[16384]{0}', space=vmem, size = 0x4000, scoped, tag = 'output window, operand 0, single buffered']
    #allocation3 [shape = 's32[2]{0}', space=sflag, size = 0x8, scoped, tag = 'scoped memory for tpu_custom_call.1']
    %10 = vsyncpa [#allocation3], 0
    loop: start=0, step=1, limit=5
    $region2: #{tpu_custom_call.1} parent=1 // loop_pre_header
      _
    $region3: #{tpu_custom_call.1} parent=1 // loop_header
      %s12 = sphi 0, %s16
      %p13 = scmp.ge.s32.totalorder %s12, 5
      %s19 = sphi 0, %s31
      %s20 = sphi 0, %s27
      %s21 = sphi 0, %s19
      %s22 = sphi 0, %s20
      %s23 = sphi 0, %s21
      %s24 = sphi 0, %s22
      %s36 = sphi 0, %s38
      %s39 = sphi 0, %s36
      %s40 = sphi 0, %s39
      %s56 = sphi 0, %s40
      %s62 = sphi 0, %s64
      %s65 = sphi 0, %s62
      %s66 = sphi 0, %s65
      %s82 = sphi 0, %s66
      %s88 = sphi 0, %s90
      %s91 = sphi 0, %s88
      %s92 = sphi 0, %s91
      %s108 = sphi 0, %s92
      %s114 = sphi 0, %s116
      %s117 = sphi 0, %s114
      %s118 = sphi 0, %s117
      %s134 = sphi 0, %s118
      %s140 = sphi 0, %s142
      %s143 = sphi 0, %s140
      %s144 = sphi 0, %s143
      %s160 = sphi 0, %s144
      %s166 = sphi 0, %s168
      %s169 = sphi 0, %s166
      %s170 = sphi 0, %s169
      %s186 = sphi 0, %s170
    $region4: #{tpu_custom_call.1} parent=1 // loop_header_branch
      %15 = sbr.rel (%p13) target = $region8
    $region5: #{tpu_custom_call.1} parent=1 // loop_body
      %s17 = ssub.s32 %s12, 1
      %s18 = ssub.s32 %s12, 2
      %s25 = sadd.s32 1, %s20
      %p26 = scmp.ge.s32.totalorder %s25, 3
      %s27 = scalar_select %p26, 0, %s25
      %s28 = sadd.s32 1, %s19
      %s29 = scalar_select %p26, %s28, %s19
      %p30 = scmp.ge.s32.totalorder %s29, 1
      %s31 = scalar_select %p30, 0, %s29
      %s32 = ssub.s32 %s20, %s27
      %s33 = ssub.s32 %s19, %s31
      %s34 = sor.u32 %s32, %s33
      %p35 = scmp.eq.s32.totalorder %s34, 0
      %s37 = sadd.s32 %s36, 1
      %s38 = scalar_select %p35, %s36, %s37
      %p41 = pneg %p35
      %p42 = scmp.eq.s32.totalorder %s12, 2
      %p43 = por %p41, %p42
      %p44 = scmp.ne.s32.totalorder %s36, %s39
      %p45 = scmp.eq.s32.totalorder %s12, 0
      %p46 = por %p44, %p45
      %p47 = scmp.ne.s32.totalorder %s36, %s39
      %p48 = scmp.eq.s32.totalorder %s17, 2
      %p49 = por %p47, %p48
      %p50 = scmp.ne.s32.totalorder %s39, %s40
      %p51 = scmp.eq.s32.totalorder %s17, 0
      %p52 = por %p50, %p51
      %p53 = scmp.ne.s32.totalorder %s39, %s40
      %p54 = scmp.eq.s32.totalorder %s18, 2
      %p55 = por %p53, %p54
      %p57 = scmp.ne.s32.totalorder %s40, %s56
      %p58 = scmp.eq.s32.totalorder %s18, 0
      %p59 = por %p57, %p58
      %s60 = ssub.s32 %s20, %s27
      %p61 = scmp.eq.s32.totalorder %s60, 0
      %s63 = sadd.s32 %s62, 1
      %s64 = scalar_select %p61, %s62, %s63
      %p67 = pneg %p61
      %p68 = scmp.eq.s32.totalorder %s12, 2
      %p69 = por %p67, %p68
      %p70 = scmp.ne.s32.totalorder %s62, %s65
      %p71 = scmp.eq.s32.totalorder %s12, 0
      %p72 = por %p70, %p71
      %p73 = scmp.ne.s32.totalorder %s62, %s65
      %p74 = scmp.eq.s32.totalorder %s17, 2
      %p75 = por %p73, %p74
      %p76 = scmp.ne.s32.totalorder %s65, %s66
      %p77 = scmp.eq.s32.totalorder %s17, 0
      %p78 = por %p76, %p77
      %p79 = scmp.ne.s32.totalorder %s65, %s66
      %p80 = scmp.eq.s32.totalorder %s18, 2
      %p81 = por %p79, %p80
      %p83 = scmp.ne.s32.totalorder %s66, %s82
      %p84 = scmp.eq.s32.totalorder %s18, 0
      %p85 = por %p83, %p84
      %s86 = ssub.s32 %s20, %s27
      %p87 = scmp.eq.s32.totalorder %s86, 0
      %s89 = sadd.s32 %s88, 1
      %s90 = scalar_select %p87, %s88, %s89
      %p93 = pneg %p87
      %p94 = scmp.eq.s32.totalorder %s12, 2
      %p95 = por %p93, %p94
      %p96 = scmp.ne.s32.totalorder %s88, %s91
      %p97 = scmp.eq.s32.totalorder %s12, 0
      %p98 = por %p96, %p97
      %p99 = scmp.ne.s32.totalorder %s88, %s91
      %p100 = scmp.eq.s32.totalorder %s17, 2
      %p101 = por %p99, %p100
      %p102 = scmp.ne.s32.totalorder %s91, %s92
      %p103 = scmp.eq.s32.totalorder %s17, 0
      %p104 = por %p102, %p103
      %p105 = scmp.ne.s32.totalorder %s91, %s92
      %p106 = scmp.eq.s32.totalorder %s18, 2
      %p107 = por %p105, %p106
      %p109 = scmp.ne.s32.totalorder %s92, %s108
      %p110 = scmp.eq.s32.totalorder %s18, 0
      %p111 = por %p109, %p110
      %s112 = ssub.s32 %s20, %s27
      %p113 = scmp.eq.s32.totalorder %s112, 0
      %s115 = sadd.s32 %s114, 1
      %s116 = scalar_select %p113, %s114, %s115
      %p119 = pneg %p113
      %p120 = scmp.eq.s32.totalorder %s12, 2
      %p121 = por %p119, %p120
      %p122 = scmp.ne.s32.totalorder %s114, %s117
      %p123 = scmp.eq.s32.totalorder %s12, 0
      %p124 = por %p122, %p123
      %p125 = scmp.ne.s32.totalorder %s114, %s117
      %p126 = scmp.eq.s32.totalorder %s17, 2
      %p127 = por %p125, %p126
      %p128 = scmp.ne.s32.totalorder %s117, %s118
      %p129 = scmp.eq.s32.totalorder %s17, 0
      %p130 = por %p128, %p129
      %p131 = scmp.ne.s32.totalorder %s117, %s118
      %p132 = scmp.eq.s32.totalorder %s18, 2
      %p133 = por %p131, %p132
      %p135 = scmp.ne.s32.totalorder %s118, %s134
      %p136 = scmp.eq.s32.totalorder %s18, 0
      %p137 = por %p135, %p136
      %s138 = ssub.s32 %s20, %s27
      %p139 = scmp.eq.s32.totalorder %s138, 0
      %s141 = sadd.s32 %s140, 1
      %s142 = scalar_select %p139, %s140, %s141
      %p145 = pneg %p139
      %p146 = scmp.eq.s32.totalorder %s12, 2
      %p147 = por %p145, %p146
      %p148 = scmp.ne.s32.totalorder %s140, %s143
      %p149 = scmp.eq.s32.totalorder %s12, 0
      %p150 = por %p148, %p149
      %p151 = scmp.ne.s32.totalorder %s140, %s143
      %p152 = scmp.eq.s32.totalorder %s17, 2
      %p153 = por %p151, %p152
      %p154 = scmp.ne.s32.totalorder %s143, %s144
      %p155 = scmp.eq.s32.totalorder %s17, 0
      %p156 = por %p154, %p155
      %p157 = scmp.ne.s32.totalorder %s143, %s144
      %p158 = scmp.eq.s32.totalorder %s18, 2
      %p159 = por %p157, %p158
      %p161 = scmp.ne.s32.totalorder %s144, %s160
      %p162 = scmp.eq.s32.totalorder %s18, 0
      %p163 = por %p161, %p162
      %s164 = ssub.s32 %s19, %s31
      %p165 = scmp.eq.s32.totalorder %s164, 0
      %s167 = sadd.s32 %s166, 1
      %s168 = scalar_select %p165, %s166, %s167
      %p171 = pneg %p165
      %p172 = scmp.eq.s32.totalorder %s12, 2
      %p173 = por %p171, %p172
      %p174 = scmp.ne.s32.totalorder %s166, %s169
      %p175 = scmp.eq.s32.totalorder %s12, 0
      %p176 = por %p174, %p175
      %p177 = scmp.ne.s32.totalorder %s166, %s169
      %p178 = scmp.eq.s32.totalorder %s17, 2
      %p179 = por %p177, %p178
      %p180 = scmp.ne.s32.totalorder %s169, %s170
      %p181 = scmp.eq.s32.totalorder %s17, 0
      %p182 = por %p180, %p181
      %p183 = scmp.ne.s32.totalorder %s169, %s170
      %p184 = scmp.eq.s32.totalorder %s18, 2
      %p185 = por %p183, %p184
      %p187 = scmp.ne.s32.totalorder %s170, %s186
      %p188 = scmp.eq.s32.totalorder %s18, 0
      %p189 = por %p187, %p188
      %p190 = scmp.le.s32.totalorder 1, %s12
      %p191 = scmp.lt.s32.totalorder %s12, 4
      %p192 = pnand %p190, %p191
      %p193 = pneg %p192
      // Predicated region
      $region9: #{tpu_custom_call.1} parent=5 // pred_check
        _
      $region10: #{tpu_custom_call.1} parent=5 // pred_check_branch
        %195 = sbr.rel (%p192) target = $region12
      $region11: #{tpu_custom_call.1} parent=5 // pred_region
        %s196 = ssub.s32 %s12, 1
      $region12: #{tpu_custom_call.1} parent=5 // pred_fallthru
        _
      %p197 = scmp.lt.s32.totalorder %s12, 3
      // Predicated region
      $region13: #{tpu_custom_call.1} parent=5 // pred_check
        %p198 = pneg %p197
      $region14: #{tpu_custom_call.1} parent=5 // pred_check_branch
        %200 = sbr.rel (%p198) target = $region16
      $region15: #{tpu_custom_call.1} parent=5 // pred_region
        // Predicated region
        $region17: #{tpu_custom_call.1} parent=15 // pred_check
          %p201 = pneg %p46
        $region18: #{tpu_custom_call.1} parent=15 // pred_check_branch
          %203 = sbr.rel (%p201) target = $region20
        $region19: #{tpu_custom_call.1} parent=15 // pred_region
          %p204 = scmp.lt.s32.totalorder %s20, 2
          %s205 = scalar_select %p204, %s20, 2
          %p206 = scmp.lt.s32.totalorder %s19, 0
          %s207 = scalar_select %p206, %s19, 0
          %s208 = sadd.s32 %s207, %s205
          %s209 = smul.addr %s208, 4
          %s210 = scalar_lea.vmem %s0, %s209
        $region20: #{tpu_custom_call.1} parent=15 // pred_fallthru
          _
        // Predicated region
        $region21: #{tpu_custom_call.1} parent=15 // pred_check
          %p211 = pneg %p72
        $region22: #{tpu_custom_call.1} parent=15 // pred_check_branch
          %213 = sbr.rel (%p211) target = $region24
        $region23: #{tpu_custom_call.1} parent=15 // pred_region
          %p214 = scmp.lt.s32.totalorder %s20, 2
          %s215 = scalar_select %p214, %s20, 2
          %s216 = smul.addr %s215, 12
          %s217 = smul.addr %s216, 8
          %s218 = scalar_lea.vmem %s1, %s217
        $region24: #{tpu_custom_call.1} parent=15 // pred_fallthru
          _
        // Predicated region
        $region25: #{tpu_custom_call.1} parent=15 // pred_check
          %p219 = pneg %p98
        $region26: #{tpu_custom_call.1} parent=15 // pred_check_branch
          %221 = sbr.rel (%p219) target = $region28
        $region27: #{tpu_custom_call.1} parent=15 // pred_region
          %p222 = scmp.lt.s32.totalorder %s20, 2
          %s223 = scalar_select %p222, %s20, 2
          %s224 = smul.addr %s223, 8
          %s225 = smul.addr %s224, 8
          %s226 = scalar_lea.vmem %s2, %s225
        $region28: #{tpu_custom_call.1} parent=15 // pred_fallthru
          _
        // Predicated region
        $region29: #{tpu_custom_call.1} parent=15 // pred_check
          %p227 = pneg %p124
        $region30: #{tpu_custom_call.1} parent=15 // pred_check_branch
          %229 = sbr.rel (%p227) target = $region32
        $region31: #{tpu_custom_call.1} parent=15 // pred_region
          %p230 = scmp.lt.s32.totalorder %s20, 2
          %s231 = scalar_select %p230, %s20, 2
          %s232 = smul.addr %s231, 4
          %s233 = smul.addr %s232, 8
          %s234 = scalar_lea.vmem %s3, %s233
        $region32: #{tpu_custom_call.1} parent=15 // pred_fallthru
          _
        // Predicated region
        $region33: #{tpu_custom_call.1} parent=15 // pred_check
          %p235 = pneg %p150
        $region34: #{tpu_custom_call.1} parent=15 // pred_check_branch
          %237 = sbr.rel (%p235) target = $region36
        $region35: #{tpu_custom_call.1} parent=15 // pred_region
          %p238 = scmp.lt.s32.totalorder %s20, 2
          %s239 = scalar_select %p238, %s20, 2
          %s240 = smul.addr %s239, 12
          %s241 = smul.addr %s240, 8
          %s242 = scalar_lea.vmem %s4, %s241
        $region36: #{tpu_custom_call.1} parent=15 // pred_fallthru
          _
      $region16: #{tpu_custom_call.1} parent=5 // pred_fallthru
        _
      %p243 = scmp.le.s32.totalorder 1, %s12
      %p244 = scmp.lt.s32.totalorder %s12, 4
      %p245 = pnand %p243, %p244
      %p246 = pneg %p245
      // Predicated region
      $region37: #{tpu_custom_call.1} parent=5 // pred_check
        _
      $region38: #{tpu_custom_call.1} parent=5 // pred_check_branch
        %248 = sbr.rel (%p245) target = $region40
      $region39: #{tpu_custom_call.1} parent=5 // pred_region
        %s249 = ssub.s32 %s12, 1
        %p250 = scmp.lt.s32.totalorder %s22, 2
        %s251 = scalar_select %p250, %s22, 2
        %p252 = scmp.lt.s32.totalorder %s21, 0
        %s253 = scalar_select %p252, %s21, 0
        %s254 = sadd.s32 %s253, %s251
        %s255 = smul.addr %s254, 4
        %s256 = scalar_lea.vmem %s0, %s255
        %p257 = pneg %p52
        %p258 = pneg %p49
        %p259 = scmp.lt.s32.totalorder %s22, 2
        %s260 = scalar_select %p259, %s22, 2
        %s261 = smul.addr %s260, 12
        %s262 = smul.addr %s261, 8
        %s263 = scalar_lea.vmem %s1, %s262
        %p264 = pneg %p78
        %p265 = pneg %p75
        %p266 = scmp.lt.s32.totalorder %s22, 2
        %s267 = scalar_select %p266, %s22, 2
        %s268 = smul.addr %s267, 8
        %s269 = smul.addr %s268, 8
        %s270 = scalar_lea.vmem %s2, %s269
        %p271 = pneg %p104
        %p272 = pneg %p101
        %p273 = scmp.lt.s32.totalorder %s22, 2
        %s274 = scalar_select %p273, %s22, 2
        %s275 = smul.addr %s274, 4
        %s276 = smul.addr %s275, 8
        %s277 = scalar_lea.vmem %s3, %s276
        %p278 = pneg %p130
        %p279 = pneg %p127
        %p280 = scmp.lt.s32.totalorder %s22, 2
        %s281 = scalar_select %p280, %s22, 2
        %s282 = smul.addr %s281, 12
        %s283 = smul.addr %s282, 8
        %s284 = scalar_lea.vmem %s4, %s283
        %p285 = pneg %p156
        %p286 = pneg %p153
        %p287 = pneg %p182
        %p288 = pneg %p179
        %p289 = scmp.lt.s32.totalorder %s22, 2
        %s290 = scalar_select %p289, %s22, 2
        %p291 = scmp.lt.s32.totalorder %s21, 0
        %s292 = scalar_select %p291, %s21, 0
        %s293 = sadd.s32 %s292, %s290
        %s294 = smul.addr %s293, 4
        %s295 = scalar_lea.vmem %s0, %s294
        %p296 = scmp.lt.s32.totalorder %s22, 2
        %s297 = scalar_select %p296, %s22, 2
        %s298 = smul.addr %s297, 12
        %s299 = smul.addr %s298, 8
        %s300 = scalar_lea.vmem %s1, %s299
        %p301 = scmp.lt.s32.totalorder %s22, 2
        %s302 = scalar_select %p301, %s22, 2
        %s303 = smul.addr %s302, 8
        %s304 = smul.addr %s303, 8
        %s305 = scalar_lea.vmem %s2, %s304
        %p306 = scmp.lt.s32.totalorder %s22, 2
        %s307 = scalar_select %p306, %s22, 2
        %s308 = smul.addr %s307, 4
        %s309 = smul.addr %s308, 8
        %s310 = scalar_lea.vmem %s3, %s309
        %p311 = scmp.lt.s32.totalorder %s22, 2
        %s312 = scalar_select %p311, %s22, 2
        %s313 = smul.addr %s312, 12
        %s314 = smul.addr %s313, 8
        %s315 = scalar_lea.vmem %s4, %s314
        %v316 = vld [vmem:[%s295] sm:$0xf]
        %v317 = vld [vmem:[%s300] sm:$0xff]
        %v318 = vld [vmem:[%s300 + $0x8] sm:$0xff]
        %v319 = vld [vmem:[%s300 + $0x10] sm:$0xff]
        %v320 = vld [vmem:[%s300 + $0x18] sm:$0xff]
        %v321 = vld [vmem:[%s300 + $0x20] sm:$0xff]
        %v322 = vld [vmem:[%s300 + $0x28] sm:$0xff]
        %v323 = vld [vmem:[%s300 + $0x30] sm:$0xff]
        %v324 = vld [vmem:[%s300 + $0x38] sm:$0xff]
        %v325 = vld [vmem:[%s300 + $0x40] sm:$0xff]
        %v326 = vld [vmem:[%s300 + $0x48] sm:$0xff]
        %v327 = vld [vmem:[%s300 + $0x50] sm:$0xff]
        %v328 = vld [vmem:[%s300 + $0x58] sm:$0xff]
        %v329 = vld [vmem:[%s315] sm:$0xff]
        %v330 = vld [vmem:[%s315 + $0x8] sm:$0xff]
        %v331 = vld [vmem:[%s315 + $0x10] sm:$0xff]
        %v332 = vld [vmem:[%s315 + $0x18] sm:$0xff]
        %v333 = vld [vmem:[%s315 + $0x20] sm:$0xff]
        %v334 = vld [vmem:[%s315 + $0x28] sm:$0xff]
        %v335 = vld [vmem:[%s315 + $0x30] sm:$0xff]
        %v336 = vld [vmem:[%s315 + $0x38] sm:$0xff]
        %v337 = vld [vmem:[%s315 + $0x40] sm:$0xff]
        %v338 = vld [vmem:[%s315 + $0x48] sm:$0xff]
        %v339 = vld [vmem:[%s315 + $0x50] sm:$0xff]
        %v340 = vld [vmem:[%s315 + $0x58] sm:$0xff]
        %342 = vset.pattern.permute.xlu0 0
        %343 = vperm.xlu0 %342, %v329
        %v344 = vpop.permute.xlu0 %343
        %347 = vset.pattern.permute.xlu0 0
        %348 = vperm.xlu0 %347, %v330
        %v349 = vpop.permute.xlu0 %348
        %352 = vset.pattern.permute.xlu0 0
        %353 = vperm.xlu0 %352, %v331
        %v354 = vpop.permute.xlu0 %353
        %357 = vset.pattern.permute.xlu0 0
        %358 = vperm.xlu0 %357, %v332
        %v359 = vpop.permute.xlu0 %358
        %362 = vset.pattern.permute.xlu0 0
        %363 = vperm.xlu0 %362, %v333
        %v364 = vpop.permute.xlu0 %363
        %367 = vset.pattern.permute.xlu0 0
        %368 = vperm.xlu0 %367, %v334
        %v369 = vpop.permute.xlu0 %368
        %372 = vset.pattern.permute.xlu0 0
        %373 = vperm.xlu0 %372, %v335
        %v374 = vpop.permute.xlu0 %373
        %377 = vset.pattern.permute.xlu0 0
        %378 = vperm.xlu0 %377, %v336
        %v379 = vpop.permute.xlu0 %378
        %382 = vset.pattern.permute.xlu0 0
        %383 = vperm.xlu0 %382, %v337
        %v384 = vpop.permute.xlu0 %383
        %387 = vset.pattern.permute.xlu0 0
        %388 = vperm.xlu0 %387, %v338
        %v389 = vpop.permute.xlu0 %388
        %392 = vset.pattern.permute.xlu0 0
        %393 = vperm.xlu0 %392, %v339
        %v394 = vpop.permute.xlu0 %393
        %397 = vset.pattern.permute.xlu0 0
        %398 = vperm.xlu0 %397, %v340
        %v399 = vpop.permute.xlu0 %398
        %vm401 = vcmask 31744
        %v403 = vsel %vm401, %v317, 0
        %v406 = vsel %vm401, %v318, 0
        %v409 = vsel %vm401, %v319, 0
        %v412 = vsel %vm401, %v320, 0
        %v415 = vsel %vm401, %v321, 0
        %v418 = vsel %vm401, %v322, 0
        %v421 = vsel %vm401, %v323, 0
        %v424 = vsel %vm401, %v324, 0
        %v427 = vsel %vm401, %v325, 0
        %v430 = vsel %vm401, %v326, 0
        %v433 = vsel %vm401, %v327, 0
        %v436 = vsel %vm401, %v328, 0
        %vm438 = vcmask 1043456
        %v440 = vsel %vm438, %v316, 0
        %442 = vmatprep.subr.mxu0 0.0
        %443 = vmatpush1.msra.mxu0 %v440
        %444 = vmatprep.subr.mxu0 0.0
        %445 = vmatpush1.msra.mxu0 0.0
        %446 = vmatprep.subr.mxu0 0.0
        %447 = vmatpush1.msra.mxu0 0.0
        %448 = vmatprep.subr.mxu0 0.0
        %449 = vmatpush1.msra.mxu0 0.0
        %450 = vmatprep.subr.mxu0 0.0
        %451 = vmatpush1.msra.mxu0 0.0
        %452 = vmatprep.subr.mxu0 0.0
        %453 = vmatpush1.msra.mxu0 0.0
        %454 = vmatprep.subr.mxu0 0.0
        %455 = vmatpush1.msra.mxu0 0.0
        %456 = vmatprep.subr.mxu0 0.0
        %457 = vmatpush1.msra.mxu0 0.0
        %458 = vmatprep.subr.mxu0 0.0
        %459 = vmatpush1.msra.mxu0 0.0
        %460 = vmatprep.subr.mxu0 0.0
        %461 = vmatpush1.msra.mxu0 0.0
        %462 = vmatprep.subr.mxu0 0.0
        %463 = vmatpush1.msra.mxu0 0.0
        %464 = vmatprep.subr.mxu0 0.0
        %465 = vmatpush1.msra.mxu0 0.0
        %466 = vmatprep.subr.mxu0 0.0
        %467 = vmatpush1.msra.mxu0 0.0
        %468 = vmatprep.subr.mxu0 0.0
        %469 = vmatpush1.msra.mxu0 0.0
        %470 = vmatprep.subr.mxu0 0.0
        %471 = vmatpush1.msra.mxu0 0.0
        %472 = vmatprep.subr.mxu0 0.0
        %473 = vmatpush1.msra.mxu0 0.0
        %474 = vmatprep.subr.mxu0 0.0
        %475 = vmatpush1.msra.mxu0 0.0
        %476 = vmatprep.subr.mxu0 0.0
        %477 = vmatpush1.msra.mxu0 0.0
        %478 = vmatprep.subr.mxu0 0.0
        %479 = vmatpush1.msra.mxu0 0.0
        %480 = vmatprep.subr.mxu0 0.0
        %481 = vmatpush1.msra.mxu0 0.0
        %482 = vmatprep.subr.mxu0 0.0
        %483 = vmatpush1.msra.mxu0 0.0
        %484 = vmatprep.subr.mxu0 0.0
        %485 = vmatpush1.msra.mxu0 0.0
        %486 = vmatprep.subr.mxu0 0.0
        %487 = vmatpush1.msra.mxu0 0.0
        %488 = vmatprep.subr.mxu0 0.0
        %489 = vmatpush1.msra.mxu0 0.0
        %490 = vmatprep.subr.mxu0 0.0
        %491 = vmatpush1.msra.mxu0 0.0
        %492 = vmatprep.subr.mxu0 0.0
        %493 = vmatpush1.msra.mxu0 0.0
        %494 = vmatprep.subr.mxu0 0.0
        %495 = vmatpush1.msra.mxu0 0.0
        %496 = vmatprep.subr.mxu0 0.0
        %497 = vmatpush1.msra.mxu0 0.0
        %498 = vmatprep.subr.mxu0 0.0
        %499 = vmatpush1.msra.mxu0 0.0
        %500 = vmatprep.subr.mxu0 0.0
        %501 = vmatpush1.msra.mxu0 0.0
        %502 = vmatprep.subr.mxu0 0.0
        %503 = vmatpush1.msra.mxu0 0.0
        %504 = vmatprep.subr.mxu0 0.0
        %505 = vmatpush1.msra.mxu0 0.0
        %506 = vmatprep.mubr.f32.mxu0 0.0
        %507 = vmatmul.mubr.f32.gmra.mrb[0].mxu0 %v403
        %v508 = vpop.f32.mrb[0].mxu0
        %v509 = vadd.f32 %v344, %v508
        %v510 = vpop.f32.mrb[0].mxu0
        %511 = vmatprep.mubr.f32.mxu0 0.0
        %512 = vmatmul.mubr.f32.gmra.mrb[0].mxu0 %v406
        %v513 = vpop.f32.mrb[0].mxu0
        %v514 = vadd.f32 %v349, %v513
        %v515 = vpop.f32.mrb[0].mxu0
        %516 = vmatprep.mubr.f32.mxu0 0.0
        %517 = vmatmul.mubr.f32.gmra.mrb[0].mxu0 %v409
        %v518 = vpop.f32.mrb[0].mxu0
        %v519 = vadd.f32 %v354, %v518
        %v520 = vpop.f32.mrb[0].mxu0
        %521 = vmatprep.mubr.f32.mxu0 0.0
        %522 = vmatmul.mubr.f32.gmra.mrb[0].mxu0 %v412
        %v523 = vpop.f32.mrb[0].mxu0
        %v524 = vadd.f32 %v359, %v523
        %v525 = vpop.f32.mrb[0].mxu0
        %526 = vmatprep.mubr.f32.mxu0 0.0
        %527 = vmatmul.mubr.f32.gmra.mrb[0].mxu0 %v415
        %v528 = vpop.f32.mrb[0].mxu0
        %v529 = vadd.f32 %v364, %v528
        %v530 = vpop.f32.mrb[0].mxu0
        %531 = vmatprep.mubr.f32.mxu0 0.0
        %532 = vmatmul.mubr.f32.gmra.mrb[0].mxu0 %v418
        %v533 = vpop.f32.mrb[0].mxu0
        %v534 = vadd.f32 %v369, %v533
        %v535 = vpop.f32.mrb[0].mxu0
        %536 = vmatprep.mubr.f32.mxu0 0.0
        %537 = vmatmul.mubr.f32.gmra.mrb[0].mxu0 %v421
        %v538 = vpop.f32.mrb[0].mxu0
        %v539 = vadd.f32 %v374, %v538
        %v540 = vpop.f32.mrb[0].mxu0
        %541 = vmatprep.mubr.f32.mxu0 0.0
        %542 = vmatmul.mubr.f32.gmra.mrb[0].mxu0 %v424
        %v543 = vpop.f32.mrb[0].mxu0
        %v544 = vadd.f32 %v379, %v543
        %v545 = vpop.f32.mrb[0].mxu0
        %546 = vmatprep.mubr.f32.mxu0 0.0
        %547 = vmatmul.mubr.f32.gmra.mrb[0].mxu0 %v427
        %v548 = vpop.f32.mrb[0].mxu0
        %v549 = vadd.f32 %v384, %v548
        %v550 = vpop.f32.mrb[0].mxu0
        %551 = vmatprep.mubr.f32.mxu0 0.0
        %552 = vmatmul.mubr.f32.gmra.mrb[0].mxu0 %v430
        %v553 = vpop.f32.mrb[0].mxu0
        %v554 = vadd.f32 %v389, %v553
        %v555 = vpop.f32.mrb[0].mxu0
        %556 = vmatprep.mubr.f32.mxu0 0.0
        %557 = vmatmul.mubr.f32.gmra.mrb[0].mxu0 %v433
        %v558 = vpop.f32.mrb[0].mxu0
        %v559 = vadd.f32 %v394, %v558
        %v560 = vpop.f32.mrb[0].mxu0
        %561 = vmatprep.mubr.f32.mxu0 0.0
        %562 = vmatmul.mubr.f32.gmra.mrb[0].mxu0 %v436
        %v563 = vpop.f32.mrb[0].mxu0
        %v564 = vadd.f32 %v399, %v563
        %v565 = vpop.f32.mrb[0].mxu0
        %566 = vdwg.mxu0
        %p567 = scmp.eq.s32.totalorder %s22, 0
        // Predicated region
        $region41: #{tpu_custom_call.1} parent=39 // pred_check
          %p568 = pneg %p567
        $region42: #{tpu_custom_call.1} parent=39 // pred_check_branch
          %570 = sbr.rel (%p568) target = $region44
        $region43: #{tpu_custom_call.1} parent=39 // pred_region
          %v571 = vxor.u32 %v529, 2147483648
          %v572 = vxor.u32 %v534, 2147483648
          %v573 = vxor.u32 %v539, 2147483648
          %v574 = vxor.u32 %v544, 2147483648
          %v575 = vmul.f32 %v571, 1.442695
          %v576 = vpow.pop %v575
          %v577 = vmul.f32 %v572, 1.442695
          %v578 = vpow.pop %v577
          %v579 = vmul.f32 %v573, 1.442695
          %v580 = vpow.pop %v579
          %v581 = vmul.f32 %v574, 1.442695
          %v582 = vpow.pop %v581
          %v583 = vadd.f32 %v576, 1.0
          %v584 = vadd.f32 %v578, 1.0
          %v585 = vadd.f32 %v580, 1.0
          %v586 = vadd.f32 %v582, 1.0
          %v587 = vrcp.pop %v583
          %v588 = vmul.f32 1.0, %v587
          %v589 = vrcp.pop %v584
          %v590 = vmul.f32 1.0, %v589
          %v591 = vrcp.pop %v585
          %v592 = vmul.f32 1.0, %v591
          %v593 = vrcp.pop %v586
          %v594 = vmul.f32 1.0, %v593
          %v595 = vtanh.pop %v549
          %v596 = vtanh.pop %v554
          %v597 = vtanh.pop %v559
          %v598 = vtanh.pop %v564
          %v599 = vsub.f32 1.0, %v588
          %v600 = vsub.f32 1.0, %v590
          %v601 = vsub.f32 1.0, %v592
          %v602 = vsub.f32 1.0, %v594
          %v603 = vmul.f32 %v599, %v595
          %v604 = vmul.f32 %v600, %v596
          %v605 = vmul.f32 %v601, %v597
          %v606 = vmul.f32 %v602, %v598
          %607 = vst [vmem:[#allocation2] sm:$0xff] %v603
          %608 = vst [vmem:[#allocation2 + $0x8] sm:$0xff] %v604
          %609 = vst [vmem:[#allocation2 + $0x10] sm:$0xff] %v605
          %610 = vst [vmem:[#allocation2 + $0x18] sm:$0xff] %v606
        $region44: #{tpu_custom_call.1} parent=39 // pred_fallthru
          _
        %p611 = scmp.gt.s32.totalorder %s22, 0
        // Predicated region
        $region45: #{tpu_custom_call.1} parent=39 // pred_check
          %p612 = pneg %p611
        $region46: #{tpu_custom_call.1} parent=39 // pred_check_branch
          %614 = sbr.rel (%p612) target = $region48
        $region47: #{tpu_custom_call.1} parent=39 // pred_region
          %v615 = vld [vmem:[#allocation2] sm:$0xff]
          %v616 = vld [vmem:[#allocation2 + $0x8] sm:$0xff]
          %v617 = vld [vmem:[#allocation2 + $0x10] sm:$0xff]
          %v618 = vld [vmem:[#allocation2 + $0x18] sm:$0xff]
          %v619 = vld [vmem:[%s305] sm:$0xff]
          %v620 = vld [vmem:[%s305 + $0x8] sm:$0xff]
          %v621 = vld [vmem:[%s305 + $0x10] sm:$0xff]
          %v622 = vld [vmem:[%s305 + $0x18] sm:$0xff]
          %v623 = vld [vmem:[%s305 + $0x20] sm:$0xff]
          %v624 = vld [vmem:[%s305 + $0x28] sm:$0xff]
          %v625 = vld [vmem:[%s305 + $0x30] sm:$0xff]
          %v626 = vld [vmem:[%s305 + $0x38] sm:$0xff]
          %vm627 = vcmask 261120
          %v629 = vsel %vm627, %v619, 0
          %v632 = vsel %vm627, %v620, 0
          %v635 = vsel %vm627, %v621, 0
          %v638 = vsel %vm627, %v622, 0
          %v641 = vsel %vm627, %v623, 0
          %v644 = vsel %vm627, %v624, 0
          %v647 = vsel %vm627, %v625, 0
          %v650 = vsel %vm627, %v626, 0
          %652 = vmatprep.subr.mxu0 0.0
          %653 = vmatpush1.msra.mxu0 %v615
          %654 = vmatprep.subr.mxu0 0.0
          %655 = vmatpush1.msra.mxu0 %v616
          %656 = vmatprep.subr.mxu0 0.0
          %657 = vmatpush1.msra.mxu0 %v617
          %658 = vmatprep.subr.mxu0 0.0
          %659 = vmatpush1.msra.mxu0 %v618
          %660 = vmatprep.subr.mxu0 0.0
          %661 = vmatpush1.msra.mxu0 0.0
          %662 = vmatprep.subr.mxu0 0.0
          %663 = vmatpush1.msra.mxu0 0.0
          %664 = vmatprep.subr.mxu0 0.0
          %665 = vmatpush1.msra.mxu0 0.0
          %666 = vmatprep.subr.mxu0 0.0
          %667 = vmatpush1.msra.mxu0 0.0
          %668 = vmatprep.subr.mxu0 0.0
          %669 = vmatpush1.msra.mxu0 0.0
          %670 = vmatprep.subr.mxu0 0.0
          %671 = vmatpush1.msra.mxu0 0.0
          %672 = vmatprep.subr.mxu0 0.0
          %673 = vmatpush1.msra.mxu0 0.0
          %674 = vmatprep.subr.mxu0 0.0
          %675 = vmatpush1.msra.mxu0 0.0
          %676 = vmatprep.subr.mxu0 0.0
          %677 = vmatpush1.msra.mxu0 0.0
          %678 = vmatprep.subr.mxu0 0.0
          %679 = vmatpush1.msra.mxu0 0.0
          %680 = vmatprep.subr.mxu0 0.0
          %681 = vmatpush1.msra.mxu0 0.0
          %682 = vmatprep.subr.mxu0 0.0
          %683 = vmatpush1.msra.mxu0 0.0
          %684 = vmatprep.subr.mxu0 0.0
          %685 = vmatpush1.msra.mxu0 0.0
          %686 = vmatprep.subr.mxu0 0.0
          %687 = vmatpush1.msra.mxu0 0.0
          %688 = vmatprep.subr.mxu0 0.0
          %689 = vmatpush1.msra.mxu0 0.0
          %690 = vmatprep.subr.mxu0 0.0
          %691 = vmatpush1.msra.mxu0 0.0
          %692 = vmatprep.subr.mxu0 0.0
          %693 = vmatpush1.msra.mxu0 0.0
          %694 = vmatprep.subr.mxu0 0.0
          %695 = vmatpush1.msra.mxu0 0.0
          %696 = vmatprep.subr.mxu0 0.0
          %697 = vmatpush1.msra.mxu0 0.0
          %698 = vmatprep.subr.mxu0 0.0
          %699 = vmatpush1.msra.mxu0 0.0
          %700 = vmatprep.subr.mxu0 0.0
          %701 = vmatpush1.msra.mxu0 0.0
          %702 = vmatprep.subr.mxu0 0.0
          %703 = vmatpush1.msra.mxu0 0.0
          %704 = vmatprep.subr.mxu0 0.0
          %705 = vmatpush1.msra.mxu0 0.0
          %706 = vmatprep.subr.mxu0 0.0
          %707 = vmatpush1.msra.mxu0 0.0
          %708 = vmatprep.subr.mxu0 0.0
          %709 = vmatpush1.msra.mxu0 0.0
          %710 = vmatprep.subr.mxu0 0.0
          %711 = vmatpush1.msra.mxu0 0.0
          %712 = vmatprep.subr.mxu0 0.0
          %713 = vmatpush1.msra.mxu0 0.0
          %714 = vmatprep.subr.mxu0 0.0
          %715 = vmatpush1.msra.mxu0 0.0
          %716 = vmatprep.mubr.f32.mxu0 0.0
          %717 = vmatmul.mubr.f32.gmra.mrb[0].mxu0 %v629
          %v718 = vpop.f32.mrb[0].mxu0
          %v719 = vadd.f32 0.0, %v718
          %v720 = vpop.f32.mrb[0].mxu0
          %721 = vmatprep.mubr.f32.mxu0 0.0
          %722 = vmatmul.mubr.f32.gmra.mrb[0].mxu0 %v632
          %v723 = vpop.f32.mrb[0].mxu0
          %v724 = vadd.f32 0.0, %v723
          %v725 = vpop.f32.mrb[0].mxu0
          %726 = vmatprep.mubr.f32.mxu0 0.0
          %727 = vmatmul.mubr.f32.gmra.mrb[0].mxu0 %v635
          %v728 = vpop.f32.mrb[0].mxu0
          %v729 = vadd.f32 0.0, %v728
          %v730 = vpop.f32.mrb[0].mxu0
          %731 = vmatprep.mubr.f32.mxu0 0.0
          %732 = vmatmul.mubr.f32.gmra.mrb[0].mxu0 %v638
          %v733 = vpop.f32.mrb[0].mxu0
          %v734 = vadd.f32 0.0, %v733
          %v735 = vpop.f32.mrb[0].mxu0
          %736 = vmatprep.mubr.f32.mxu0 0.0
          %737 = vmatmul.mubr.f32.gmra.mrb[0].mxu0 %v641
          %v738 = vpop.f32.mrb[0].mxu0
          %v739 = vadd.f32 0.0, %v738
          %v740 = vpop.f32.mrb[0].mxu0
          %741 = vmatprep.mubr.f32.mxu0 0.0
          %742 = vmatmul.mubr.f32.gmra.mrb[0].mxu0 %v644
          %v743 = vpop.f32.mrb[0].mxu0
          %v744 = vadd.f32 0.0, %v743
          %v745 = vpop.f32.mrb[0].mxu0
          %746 = vmatprep.mubr.f32.mxu0 0.0
          %747 = vmatmul.mubr.f32.gmra.mrb[0].mxu0 %v647
          %v748 = vpop.f32.mrb[0].mxu0
          %v749 = vadd.f32 0.0, %v748
          %v750 = vpop.f32.mrb[0].mxu0
          %751 = vmatprep.mubr.f32.mxu0 0.0
          %752 = vmatmul.mubr.f32.gmra.mrb[0].mxu0 %v650
          %v753 = vpop.f32.mrb[0].mxu0
          %v754 = vadd.f32 0.0, %v753
          %v755 = vpop.f32.mrb[0].mxu0
          %756 = vdwg.mxu0
          %v757 = vadd.f32 %v509, %v719
          %v758 = vadd.f32 %v514, %v724
          %v759 = vadd.f32 %v519, %v729
          %v760 = vadd.f32 %v524, %v734
          %v761 = vxor.u32 %v757, 2147483648
          %v762 = vxor.u32 %v758, 2147483648
          %v763 = vxor.u32 %v759, 2147483648
          %v764 = vxor.u32 %v760, 2147483648
          %v765 = vmul.f32 %v761, 1.442695
          %v766 = vpow.pop %v765
          %v767 = vmul.f32 %v762, 1.442695
          %v768 = vpow.pop %v767
          %v769 = vmul.f32 %v763, 1.442695
          %v770 = vpow.pop %v769
          %v771 = vmul.f32 %v764, 1.442695
          %v772 = vpow.pop %v771
          %v773 = vadd.f32 %v766, 1.0
          %v774 = vadd.f32 %v768, 1.0
          %v775 = vadd.f32 %v770, 1.0
          %v776 = vadd.f32 %v772, 1.0
          %v777 = vrcp.pop %v773
          %v778 = vmul.f32 1.0, %v777
          %v779 = vrcp.pop %v774
          %v780 = vmul.f32 1.0, %v779
          %v781 = vrcp.pop %v775
          %v782 = vmul.f32 1.0, %v781
          %v783 = vrcp.pop %v776
          %v784 = vmul.f32 1.0, %v783
          %v785 = vadd.f32 %v529, %v739
          %v786 = vadd.f32 %v534, %v744
          %v787 = vadd.f32 %v539, %v749
          %v788 = vadd.f32 %v544, %v754
          %v789 = vxor.u32 %v785, 2147483648
          %v790 = vxor.u32 %v786, 2147483648
          %v791 = vxor.u32 %v787, 2147483648
          %v792 = vxor.u32 %v788, 2147483648
          %v793 = vmul.f32 %v789, 1.442695
          %v794 = vpow.pop %v793
          %v795 = vmul.f32 %v790, 1.442695
          %v796 = vpow.pop %v795
          %v797 = vmul.f32 %v791, 1.442695
          %v798 = vpow.pop %v797
          %v799 = vmul.f32 %v792, 1.442695
          %v800 = vpow.pop %v799
          %v801 = vadd.f32 %v794, 1.0
          %v802 = vadd.f32 %v796, 1.0
          %v803 = vadd.f32 %v798, 1.0
          %v804 = vadd.f32 %v800, 1.0
          %v805 = vrcp.pop %v801
          %v806 = vmul.f32 1.0, %v805
          %v807 = vrcp.pop %v802
          %v808 = vmul.f32 1.0, %v807
          %v809 = vrcp.pop %v803
          %v810 = vmul.f32 1.0, %v809
          %v811 = vrcp.pop %v804
          %v812 = vmul.f32 1.0, %v811
          %v813 = vld [vmem:[%s310] sm:$0xff]
          %v814 = vld [vmem:[%s310 + $0x8] sm:$0xff]
          %v815 = vld [vmem:[%s310 + $0x10] sm:$0xff]
          %v816 = vld [vmem:[%s310 + $0x18] sm:$0xff]
          %v817 = vmul.f32 %v778, %v615
          %v818 = vmul.f32 %v780, %v616
          %v819 = vmul.f32 %v782, %v617
          %v820 = vmul.f32 %v784, %v618
          %v822 = vsel %vm627, %v813, 0
          %v825 = vsel %vm627, %v814, 0
          %v828 = vsel %vm627, %v815, 0
          %v831 = vsel %vm627, %v816, 0
          %833 = vmatprep.subr.mxu0 0.0
          %834 = vmatpush1.msra.mxu0 %v817
          %835 = vmatprep.subr.mxu0 0.0
          %836 = vmatpush1.msra.mxu0 %v818
          %837 = vmatprep.subr.mxu0 0.0
          %838 = vmatpush1.msra.mxu0 %v819
          %839 = vmatprep.subr.mxu0 0.0
          %840 = vmatpush1.msra.mxu0 %v820
          %841 = vmatprep.subr.mxu0 0.0
          %842 = vmatpush1.msra.mxu0 0.0
          %843 = vmatprep.subr.mxu0 0.0
          %844 = vmatpush1.msra.mxu0 0.0
          %845 = vmatprep.subr.mxu0 0.0
          %846 = vmatpush1.msra.mxu0 0.0
          %847 = vmatprep.subr.mxu0 0.0
          %848 = vmatpush1.msra.mxu0 0.0
          %849 = vmatprep.subr.mxu0 0.0
          %850 = vmatpush1.msra.mxu0 0.0
          %851 = vmatprep.subr.mxu0 0.0
          %852 = vmatpush1.msra.mxu0 0.0
          %853 = vmatprep.subr.mxu0 0.0
          %854 = vmatpush1.msra.mxu0 0.0
          %855 = vmatprep.subr.mxu0 0.0
          %856 = vmatpush1.msra.mxu0 0.0
          %857 = vmatprep.subr.mxu0 0.0
          %858 = vmatpush1.msra.mxu0 0.0
          %859 = vmatprep.subr.mxu0 0.0
          %860 = vmatpush1.msra.mxu0 0.0
          %861 = vmatprep.subr.mxu0 0.0
          %862 = vmatpush1.msra.mxu0 0.0
          %863 = vmatprep.subr.mxu0 0.0
          %864 = vmatpush1.msra.mxu0 0.0
          %865 = vmatprep.subr.mxu0 0.0
          %866 = vmatpush1.msra.mxu0 0.0
          %867 = vmatprep.subr.mxu0 0.0
          %868 = vmatpush1.msra.mxu0 0.0
          %869 = vmatprep.subr.mxu0 0.0
          %870 = vmatpush1.msra.mxu0 0.0
          %871 = vmatprep.subr.mxu0 0.0
          %872 = vmatpush1.msra.mxu0 0.0
          %873 = vmatprep.subr.mxu0 0.0
          %874 = vmatpush1.msra.mxu0 0.0
          %875 = vmatprep.subr.mxu0 0.0
          %876 = vmatpush1.msra.mxu0 0.0
          %877 = vmatprep.subr.mxu0 0.0
          %878 = vmatpush1.msra.mxu0 0.0
          %879 = vmatprep.subr.mxu0 0.0
          %880 = vmatpush1.msra.mxu0 0.0
          %881 = vmatprep.subr.mxu0 0.0
          %882 = vmatpush1.msra.mxu0 0.0
          %883 = vmatprep.subr.mxu0 0.0
          %884 = vmatpush1.msra.mxu0 0.0
          %885 = vmatprep.subr.mxu0 0.0
          %886 = vmatpush1.msra.mxu0 0.0
          %887 = vmatprep.subr.mxu0 0.0
          %888 = vmatpush1.msra.mxu0 0.0
          %889 = vmatprep.subr.mxu0 0.0
          %890 = vmatpush1.msra.mxu0 0.0
          %891 = vmatprep.subr.mxu0 0.0
          %892 = vmatpush1.msra.mxu0 0.0
          %893 = vmatprep.subr.mxu0 0.0
          %894 = vmatpush1.msra.mxu0 0.0
          %895 = vmatprep.subr.mxu0 0.0
          %896 = vmatpush1.msra.mxu0 0.0
          %897 = vmatprep.mubr.f32.mxu0 0.0
          %898 = vmatmul.mubr.f32.gmra.mrb[0].mxu0 %v822
          %v899 = vpop.f32.mrb[0].mxu0
          %v900 = vadd.f32 0.0, %v899
          %v901 = vpop.f32.mrb[0].mxu0
          %902 = vmatprep.mubr.f32.mxu0 0.0
          %903 = vmatmul.mubr.f32.gmra.mrb[0].mxu0 %v825
          %v904 = vpop.f32.mrb[0].mxu0
          %v905 = vadd.f32 0.0, %v904
          %v906 = vpop.f32.mrb[0].mxu0
          %907 = vmatprep.mubr.f32.mxu0 0.0
          %908 = vmatmul.mubr.f32.gmra.mrb[0].mxu0 %v828
          %v909 = vpop.f32.mrb[0].mxu0
          %v910 = vadd.f32 0.0, %v909
          %v911 = vpop.f32.mrb[0].mxu0
          %912 = vmatprep.mubr.f32.mxu0 0.0
          %913 = vmatmul.mubr.f32.gmra.mrb[0].mxu0 %v831
          %v914 = vpop.f32.mrb[0].mxu0
          %v915 = vadd.f32 0.0, %v914
          %v916 = vpop.f32.mrb[0].mxu0
          %917 = vdwg.mxu0
          %v918 = vadd.f32 %v549, %v900
          %v919 = vadd.f32 %v554, %v905
          %v920 = vadd.f32 %v559, %v910
          %v921 = vadd.f32 %v564, %v915
          %v922 = vtanh.pop %v918
          %v923 = vtanh.pop %v919
          %v924 = vtanh.pop %v920
          %v925 = vtanh.pop %v921
          %v926 = vsub.f32 %v615, %v922
          %v927 = vsub.f32 %v616, %v923
          %v928 = vsub.f32 %v617, %v924
          %v929 = vsub.f32 %v618, %v925
          %v930 = vmul.f32 %v806, %v926
          %v931 = vmul.f32 %v808, %v927
          %v932 = vmul.f32 %v810, %v928
          %v933 = vmul.f32 %v812, %v929
          %v934 = vadd.f32 %v922, %v930
          %v935 = vadd.f32 %v923, %v931
          %v936 = vadd.f32 %v924, %v932
          %v937 = vadd.f32 %v925, %v933
          %938 = vst [vmem:[#allocation2] sm:$0xff] %v934
          %939 = vst [vmem:[#allocation2 + $0x8] sm:$0xff] %v935
          %940 = vst [vmem:[#allocation2 + $0x10] sm:$0xff] %v936
          %941 = vst [vmem:[#allocation2 + $0x18] sm:$0xff] %v937
        $region48: #{tpu_custom_call.1} parent=39 // pred_fallthru
          _
        // Predicated region
        $region49: #{tpu_custom_call.1} parent=39 // pred_check
          %p942 = pneg %p179
        $region50: #{tpu_custom_call.1} parent=39 // pred_check_branch
          %944 = sbr.rel (%p942) target = $region52
        $region51: #{tpu_custom_call.1} parent=39 // pred_region
          %s946 = ssub.s32 512, 512
          %947 = vsyncadd [#allocation3], %s946
          %s948 = smul.addr %s21, 128
          %s949 = scalar_lea.hbm %s5, %s948
          %s950 = sshll.u32 [#allocation2], 4
          %s951 = int_to_ptr.vmem [resolvable:$true] %s950
          %956 = dma.vmem_to_hbm [thread:$0]  %s951, 512, %s949, [#allocation3], 128, 128, 8
        $region52: #{tpu_custom_call.1} parent=39 // pred_fallthru
          _
        // Predicated region
        $region53: #{tpu_custom_call.1} parent=39 // pred_check
          %p957 = pneg %p179
        $region54: #{tpu_custom_call.1} parent=39 // pred_check_branch
          %959 = sbr.rel (%p957) target = $region56
        $region55: #{tpu_custom_call.1} parent=39 // pred_region
          %960 = dma.done [#allocation3], 512
        $region56: #{tpu_custom_call.1} parent=39 // pred_fallthru
          _
      $region40: #{tpu_custom_call.1} parent=5 // pred_fallthru
        _
      %p961 = scmp.le.s32.totalorder 2, %s12
      // Predicated region
      $region57: #{tpu_custom_call.1} parent=5 // pred_check
        %p962 = pneg %p961
      $region58: #{tpu_custom_call.1} parent=5 // pred_check_branch
        %964 = sbr.rel (%p962) target = $region60
      $region59: #{tpu_custom_call.1} parent=5 // pred_region
        %s965 = ssub.s32 %s12, 2
      $region60: #{tpu_custom_call.1} parent=5 // pred_fallthru
        _
    $region6: #{tpu_custom_call.1} parent=1 // loop_footer
      %s16 = sadd.s32 1, %s12
    $region7: #{tpu_custom_call.1} parent=1 // loop_footer_branch
      %11 = sbr.rel target = $region3
    $region8: #{tpu_custom_call.1} parent=1 // loop_exit
      _
    %966 = vsyncpa [#allocation3], 1
    %s967 = scalar_lea.sflag [#allocation3], 1
    %968 = vsyncpa %s967, 1

</llo_original>
